<compile_context>
chip_gen: v7x
topology: tpu7x:2x2x1
jax: 0.10.0
libtpu: 0.0.40
codegen_flags: <defaults>
</compile_context>

<pallas_src>
import functools
import math

import jax
import jax.numpy as jnp
from jax.experimental import pallas as pl
from jax.experimental.pallas import tpu as pltpu


LN_EPS = 1e-5  # nn.LayerNorm default (the module never forwards layer_norm_eps)
_INV_SQRT2 = 1.0 / math.sqrt(2.0)


# ----------------------------- helpers ------------------------------------ #

def _vmem_budget_bytes():
    """~75% of physical per-core VMEM: ≈48 MiB on v7x (64 MiB/TC), ≈96 MiB on
    v5e/v6e (128 MiB). Leaves headroom for Mosaic internal scratch."""
    phys = 64 << 20  # conservative default (v7x per-TensorCore)
    try:
        info = pltpu.get_tpu_info()
        phys = int(getattr(info, "vmem_capacity_bytes", phys) or phys)
    except Exception:  # best-effort hardware query; default stays conservative
        pass
    return (phys * 3) // 4


def _choose_block_m(M, H, itemsize, avail_bytes, sublane):
    """VMEM-aware M tile. Single full-extent tile when M is small (no padding,
    no extra pipeline steps); otherwise prefer 128-multiples (fills the MXU M
    dim), capped so double-buffered x/out tiles + f32 temps fit `avail_bytes`."""
    per_row = H * (4 * itemsize + 16)  # x+out (2 bufs each) + ~4 f32 temps
    cap = max(sublane, int(avail_bytes // max(per_row, 1)))
    if M <= min(cap, 512):
        return M                       # one grid step, block == full extent
    bm = min(512, cap)
    if bm >= 128:
        bm = (bm // 128) * 128
        for cand in (256, 128):        # prefer a tail-free tiling
            if cand <= bm and M % cand == 0:
                return cand
        return bm
    return max(sublane, (bm // sublane) * sublane)


def _gelu(h, approximate):
    if approximate:
        # tanh approx: transcendental goes to the EUP slot (perf), numerics differ.
        return jax.nn.gelu(h, approximate=True)
    return 0.5 * h * (1.0 + jax.lax.erf(h * _INV_SQRT2))  # exact torch parity


# ----------------------------- kernels ------------------------------------- #

def _nlb_resident_kernel(x_ref, gamma_ref, beta_ref, wt_ref, b_ref, o_ref, *,
                         approximate_gelu):
    # x_ref (tm,H) | gamma/beta/bias (1,H) f32 | wt_ref (H,H) bf16 | o_ref (tm,H)
    x = x_ref[...].astype(jnp.float32)
    mean = jnp.mean(x, axis=-1, keepdims=True)
    c = x - mean
    var = jnp.mean(c * c, axis=-1, keepdims=True)
    h = c * jax.lax.rsqrt(var + LN_EPS)
    h = h * gamma_ref[...] + beta_ref[...]
    g = _gelu(h, approximate_gelu)
    y = jnp.dot(g.astype(wt_ref.dtype), wt_ref[...],
                preferred_element_type=jnp.float32)
    y = y + b_ref[...]
    # residual: re-read the VMEM-resident x tile (short live range across the dot)
    o_ref[...] = (y + x_ref[...].astype(jnp.float32)).astype(o_ref.dtype)


def _nlb_ntiled_kernel(x_ref, xres_ref, gamma_ref, beta_ref, wt_ref, b_ref,
                       o_ref, *, approximate_gelu):
    # x_ref (tm,H) rows | xres_ref (tm,tn) residual cols | wt_ref (H,tn) bf16
    # b_ref (1,tn) | o_ref (tm,tn).  LN+GELU recomputed per N tile: for the
    # large H where this path triggers, that is <2% of the per-tile matmul.
    x = x_ref[...].astype(jnp.float32)
    mean = jnp.mean(x, axis=-1, keepdims=True)
    c = x - mean
    var = jnp.mean(c * c, axis=-1, keepdims=True)
    h = c * jax.lax.rsqrt(var + LN_EPS)
    h = h * gamma_ref[...] + beta_ref[...]
    g = _gelu(h, approximate_gelu)
    y = jnp.dot(g.astype(wt_ref.dtype), wt_ref[...],
                preferred_element_type=jnp.float32)
    y = y + b_ref[...]
    o_ref[...] = (y + xres_ref[...].astype(jnp.float32)).astype(o_ref.dtype)


# ----------------------------- builders ------------------------------------ #

def _build_resident(x_dtype, M, H, block_m, n_steps, sem, vmem_limit, cost,
                    approximate_gelu, single_buffer_consts):
    # Constant-index operands (gamma/beta/W^T/bias) never re-fetch; request
    # single buffering to halve their VMEM footprint (weight dominates).
    pm = {"pipeline_mode": pl.Buffered(1)} if single_buffer_consts else {}
    kern = functools.partial(_nlb_resident_kernel,
                             approximate_gelu=approximate_gelu)
    grid_spec = pltpu.PrefetchScalarGridSpec(
        num_scalar_prefetch=0,
        grid=(n_steps,),
        in_specs=[
            pl.BlockSpec((block_m, H), lambda i: (i, 0)),     # x tile
            pl.BlockSpec((1, H), lambda i: (0, 0), **pm),     # gamma
            pl.BlockSpec((1, H), lambda i: (0, 0), **pm),     # beta
            pl.BlockSpec((H, H), lambda i: (0, 0), **pm),     # W^T (bf16)
            pl.BlockSpec((1, H), lambda i: (0, 0), **pm),     # bias
        ],
        out_specs=pl.BlockSpec((block_m, H), lambda i: (i, 0)),
    )
    return pl.pallas_call(
        kern,
        out_shape=jax.ShapeDtypeStruct((M, H), x_dtype),
        grid_spec=grid_spec,
        compiler_params=pltpu.CompilerParams(
            dimension_semantics=sem, vmem_limit_bytes=vmem_limit),
        cost_estimate=cost,
    )


def _build_ntiled(x_dtype, M, H, block_m, tn, n_n, n_m, vmem_limit, cost,
                  approximate_gelu):
    kern = functools.partial(_nlb_ntiled_kernel,
                             approximate_gelu=approximate_gelu)
    grid_spec = pltpu.PrefetchScalarGridSpec(
        num_scalar_prefetch=0,
        # N outermost: weight column-block is resident across the inner M sweep
        # and megacore shards N (each v7x TC only fetches its half of the weight).
        grid=(n_n, n_m),
        in_specs=[
            pl.BlockSpec((block_m, H), lambda j, i: (i, 0)),   # x rows (LN input)
            pl.BlockSpec((block_m, tn), lambda j, i: (i, j)),  # x cols (residual)
            pl.BlockSpec((1, H), lambda j, i: (0, 0)),         # gamma
            pl.BlockSpec((1, H), lambda j, i: (0, 0)),         # beta
            pl.BlockSpec((H, tn), lambda j, i: (0, j)),        # W^T column block
            pl.BlockSpec((1, tn), lambda j, i: (0, j)),        # bias block
        ],
        out_specs=pl.BlockSpec((block_m, tn), lambda j, i: (i, j)),
    )
    return pl.pallas_call(
        kern,
        out_shape=jax.ShapeDtypeStruct((M, H), x_dtype),
        grid_spec=grid_spec,
        compiler_params=pltpu.CompilerParams(
            dimension_semantics=("parallel", "arbitrary"),
            vmem_limit_bytes=vmem_limit),
        cost_estimate=cost,
    )


# ----------------------------- wrappers ------------------------------------ #

def prepare_params(gamma, beta, weight, bias):
    """ONE-TIME parameter prep (call at weight-load, not per forward):
    pre-transpose the Linear weight to (in,out) and cast to bf16, put the
    small params in f32 row vectors. Returns (gamma, beta, w_t_bf16, bias)."""
    H = weight.shape[0]
    return (
        jnp.asarray(gamma, jnp.float32).reshape(1, H),
        jnp.asarray(beta, jnp.float32).reshape(1, H),
        jnp.asarray(weight).T.astype(jnp.bfloat16),   # (in, out): g @ W^T
        jnp.asarray(bias, jnp.float32).reshape(1, H),
    )


def nonlinear_block_apply(x, params, *, block_m=None, approximate_gelu=False,
                          _force_ntiled=False, _force_tn=None):
    """x: (..., H); params from prepare_params. Returns x.shape / x.dtype."""
    gamma2, beta2, wt, b2 = params
    orig_shape = x.shape
    H = orig_shape[-1]
    assert wt.shape == (H, H), "weight must be (H, H)"
    x2d = x.reshape(-1, H)
    M = x2d.shape[0]

    itemsize = jnp.dtype(x.dtype).itemsize
    sublane = {4: 8, 2: 16, 1: 32}.get(itemsize, 8)
    budget = _vmem_budget_bytes()
    weight_bytes = H * H * wt.dtype.itemsize          # bf16 weight
    margin = 2 << 20

    cost = pl.CostEstimate(
        flops=2 * M * H * H,
        transcendentals=M * H,
        bytes_accessed=2 * M * H * itemsize + weight_bytes + 3 * H * 4,
    )

    def finish(out2d):
        return out2d.reshape(orig_shape)

    per_row = H * (4 * itemsize + 16)
    resident_ok = ((not _force_ntiled)
                   and weight_bytes + sublane * per_row + margin <= budget)

    if resident_ok:
        avail = budget - weight_bytes - margin
        bm = block_m or _choose_block_m(M, H, itemsize, avail, sublane)
        bm = min(M, max(sublane, bm))
        if bm < M:
            bm = max(sublane, (bm // sublane) * sublane)
        n_steps = pl.cdiv(M, bm)
        # Megacore: only shard M across TCs when the duplicated full-weight DMA
        # into both cores is amortized by enough x/out traffic (v7x concern).
        sem = (("parallel",)
               if (n_steps >= 4 and M * H * itemsize >= weight_bytes)
               else ("arbitrary",))
        est = weight_bytes + 4 * bm * H * itemsize + 16 * bm * H + margin
        vmem_limit = int(min(budget, max(est, 16 << 20)))
        args = (x2d, gamma2, beta2, wt, b2)
        try:
            return finish(_build_resident(
                x.dtype, M, H, bm, n_steps, sem, vmem_limit, cost,
                approximate_gelu, single_buffer_consts=True)(*args))
        except (TypeError, ValueError, NotImplementedError,
                pltpu.LoweringException):
            # pl.Buffered(1) unsupported in this build. Only retry with the
            # default double-buffered weight if it still fits the budget;
            # otherwise fall through to the N-tiled path (never over-commit).
            if 2 * weight_bytes + 4 * bm * H * itemsize + margin <= budget:
                return finish(_build_resident(
                    x.dtype, M, H, bm, n_steps, sem,
                    int(min(budget, max(est + weight_bytes, 16 << 20))), cost,
                    approximate_gelu, single_buffer_consts=False)(*args))

    # ---- N-tiled (weight-streaming) path: bf16 weight too big for VMEM ----
    if H % 128 != 0:
        raise ValueError(
            f"Hidden sizes needing weight N-tiling must be multiples of 128 "
            f"(got H={H}).")
    bm = block_m or min(M, 256 if H <= 2048 else 128)
    bm = min(M, max(sublane, bm))
    if bm < M:
        bm = max(sublane, (bm // sublane) * sublane)
    fixed = 4 * bm * H * itemsize + 16 * bm * H + margin
    tn = _force_tn
    if not tn:
        tn = 128
        for cand in (2048, 1024, 512, 256):
            if (cand <= H and H % cand == 0
                    and fixed + 2 * H * cand * 2 + 4 * bm * cand * (itemsize + 2)
                    <= budget):
                tn = cand
                break
    n_n, n_m = H // tn, pl.cdiv(M, bm)
    est = fixed + 2 * H * tn * 2 + 4 * bm * tn * (itemsize + 2)
    vmem_limit = int(min(budget, max(est, 16 << 20)))
    out2d = _build_ntiled(x.dtype, M, H, bm, tn, n_n, n_m, vmem_limit, cost,
                          approximate_gelu)(x2d, x2d, gamma2, beta2, wt, b2)
    return finish(out2d)


def nonlinear_block(x, gamma, beta, weight, bias, **kwargs):
    """Convenience wrapper (prepares params per call). Prefer prepare_params
    once at init + nonlinear_block_apply per forward to avoid a per-call HBM
    weight transpose/convert."""
    return nonlinear_block_apply(x, prepare_params(gamma, beta, weight, bias),
                                 **kwargs)


# ----------------------------- references ---------------------------------- #

def _reference_f32(x, gamma, beta, weight, bias):
    """Exact PyTorch-semantics reference (full f32 matmul)."""
    xf = x.astype(jnp.float32)
    mean = jnp.mean(xf, axis=-1, keepdims=True)
    var = jnp.mean((xf - mean) ** 2, axis=-1, keepdims=True)
    h = (xf - mean) * jax.lax.rsqrt(var + LN_EPS) * gamma + beta
    g = 0.5 * h * (1.0 + jax.lax.erf(h * _INV_SQRT2))
    y = g @ weight.T.astype(jnp.float32) + bias
    return (y + xf).astype(x.dtype)


def _reference_matched(x, gamma, beta, weight, bias):
    """Same math as the kernel (bf16 matmul operands, f32 accumulation)."""
    xf = x.astype(jnp.float32)
    mean = jnp.mean(xf, axis=-1, keepdims=True)
    var = jnp.mean((xf - mean) ** 2, axis=-1, keepdims=True)
    h = (xf - mean) * jax.lax.rsqrt(var + LN_EPS) * gamma + beta
    g = 0.5 * h * (1.0 + jax.lax.erf(h * _INV_SQRT2))
    gb = g.astype(jnp.bfloat16).astype(jnp.float32)
    wb = weight.T.astype(jnp.bfloat16).astype(jnp.float32)
    y = gb @ wb + bias
    return (y + xf).astype(x.dtype)


# ----------------------------- demo / test --------------------------------- #

if __name__ == "__main__":
    # Small but lane-dense shapes: hidden = 128 keeps the last dim a full vreg
    # lane width (unmasked stores, no wasted MXU/VPU lanes).
    batch, seq, hidden = 2, 8, 128

    key = jax.random.PRNGKey(0)
    kx, kg, kb, kw, kbi = jax.random.split(key, 5)

    x = jax.random.normal(kx, (batch, seq, hidden), dtype=jnp.float32)
    gamma = 1.0 + 0.1 * jax.random.normal(kg, (hidden,), dtype=jnp.float32)
    beta = 0.1 * jax.random.normal(kb, (hidden,), dtype=jnp.float32)
    bound = 1.0 / math.sqrt(hidden)
    weight = jax.random.uniform(kw, (hidden, hidden), minval=-bound,
                                maxval=bound, dtype=jnp.float32)  # torch (out,in)
    bias = jax.random.uniform(kbi, (hidden,), minval=-bound, maxval=bound,
                              dtype=jnp.float32)

    # One-time prep (hoisted out of the forward path), then apply.
    params = prepare_params(gamma, beta, weight, bias)
    out = jax.block_until_ready(nonlinear_block_apply(x, params))
    assert out.shape == x.shape and out.dtype == x.dtype

    ref_m = _reference_matched(x, gamma, beta, weight, bias)
    assert jnp.allclose(out, ref_m, atol=1e-4, rtol=1e-4), "mismatch vs matched ref"
    ref = _reference_f32(x, gamma, beta, weight, bias)
    assert jnp.allclose(out, ref, atol=3e-2, rtol=3e-2), "mismatch vs f32 ref"

    # Also exercise the N-tiled (weight-streaming) path at a tiny shape so both
    # code paths are validated (forced; normally only triggers for huge H).
    hidden2 = 256
    k2x, k2w, k2b = jax.random.split(jax.random.PRNGKey(1), 3)
    x2 = jax.random.normal(k2x, (batch, seq, hidden2), dtype=jnp.float32)
    gamma2v = 1.0 + 0.05 * jax.random.normal(k2w, (hidden2,), dtype=jnp.float32)
    beta2v = jnp.zeros((hidden2,), jnp.float32)
    bound2 = 1.0 / math.sqrt(hidden2)
    w2 = jax.random.uniform(k2w, (hidden2, hidden2), minval=-bound2,
                            maxval=bound2, dtype=jnp.float32)
    b2v = jax.random.uniform(k2b, (hidden2,), minval=-bound2, maxval=bound2,
                             dtype=jnp.float32)
    p2 = prepare_params(gamma2v, beta2v, w2, b2v)
    out2 = jax.block_until_ready(
        nonlinear_block_apply(x2, p2, _force_ntiled=True, _force_tn=128))
    ref2 = _reference_matched(x2, gamma2v, beta2v, w2, b2v)
    assert jnp.allclose(out2, ref2, atol=1e-4, rtol=1e-4), "mismatch (N-tiled)"

    print("KERNEL_OK")
</pallas_src>

<mosaic_0001>
module attributes {stable_mosaic.version = 11 : i64} {
  func.func @_nlb_resident_kernel(%arg0: i32, %arg1: memref<16x128xf32, #tpu.memory_space<vmem>>, %arg2: memref<1x128xf32, #tpu.memory_space<vmem>>, %arg3: memref<1x128xf32, #tpu.memory_space<vmem>>, %arg4: memref<128x128xbf16, #tpu.memory_space<vmem>>, %arg5: memref<1x128xf32, #tpu.memory_space<vmem>>, %arg6: memref<16x128xf32, #tpu.memory_space<vmem>>) attributes {dimension_semantics = [#tpu.dimension_semantics<arbitrary>], iteration_bounds = array<i64: 1>, scalar_prefetch = 0 : i64, scratch_operands = 0 : i64, tpu.core_type = #tpu.core_type<tc>, window_params = [{transform_indices = @transform_0, window_bounds = array<i64: 16, 128>}, {pipeline_mode = #tpu.pipeline_mode<synchronous>, transform_indices = @transform_1, window_bounds = array<i64: 1, 128>}, {pipeline_mode = #tpu.pipeline_mode<synchronous>, transform_indices = @transform_2, window_bounds = array<i64: 1, 128>}, {pipeline_mode = #tpu.pipeline_mode<synchronous>, transform_indices = @transform_3, window_bounds = array<i64: 128, 128>}, {pipeline_mode = #tpu.pipeline_mode<synchronous>, transform_indices = @transform_4, window_bounds = array<i64: 1, 128>}, {transform_indices = @transform_5, window_bounds = array<i64: 16, 128>}]} {
    %c0 = arith.constant 0 : index
    %c0_0 = arith.constant 0 : index
    %0 = vector.load %arg1[%c0, %c0_0] : memref<16x128xf32, #tpu.memory_space<vmem>>, vector<16x128xf32>
    %cst = arith.constant dense<0.000000e+00> : vector<16xf32>
    %1 = vector.multi_reduction <add>, %0, %cst [1] : vector<16x128xf32> to vector<16xf32>
    %2 = vector.shape_cast %1 : vector<16xf32> to vector<16x1xf32>
    %cst_1 = arith.constant 1.280000e+02 : f32
    %3 = vector.broadcast %cst_1 : f32 to vector<16x1xf32>
    %4 = arith.divf %2, %3 : vector<16x1xf32>
    %5 = vector.broadcast %4 : vector<16x1xf32> to vector<16x128xf32>
    %6 = arith.subf %0, %5 : vector<16x128xf32>
    %7 = arith.mulf %6, %6 : vector<16x128xf32>
    %cst_2 = arith.constant dense<0.000000e+00> : vector<16xf32>
    %8 = vector.multi_reduction <add>, %7, %cst_2 [1] : vector<16x128xf32> to vector<16xf32>
    %9 = vector.shape_cast %8 : vector<16xf32> to vector<16x1xf32>
    %cst_3 = arith.constant 1.280000e+02 : f32
    %10 = vector.broadcast %cst_3 : f32 to vector<16x1xf32>
    %11 = arith.divf %9, %10 : vector<16x1xf32>
    %cst_4 = arith.constant 9.99999974E-6 : f32
    %12 = vector.broadcast %cst_4 : f32 to vector<16x1xf32>
    %13 = arith.addf %11, %12 : vector<16x1xf32>
    %14 = math.rsqrt %13 : vector<16x1xf32>
    %15 = vector.broadcast %14 : vector<16x1xf32> to vector<16x128xf32>
    %16 = arith.mulf %6, %15 : vector<16x128xf32>
    %c0_5 = arith.constant 0 : index
    %c0_6 = arith.constant 0 : index
    %17 = vector.load %arg2[%c0_5, %c0_6] : memref<1x128xf32, #tpu.memory_space<vmem>>, vector<1x128xf32>
    %18 = vector.broadcast %17 : vector<1x128xf32> to vector<16x128xf32>
    %19 = arith.mulf %16, %18 : vector<16x128xf32>
    %c0_7 = arith.constant 0 : index
    %c0_8 = arith.constant 0 : index
    %20 = vector.load %arg3[%c0_7, %c0_8] : memref<1x128xf32, #tpu.memory_space<vmem>>, vector<1x128xf32>
    %21 = vector.broadcast %20 : vector<1x128xf32> to vector<16x128xf32>
    %22 = arith.addf %19, %21 : vector<16x128xf32>
    %cst_9 = arith.constant 5.000000e-01 : f32
    %23 = vector.broadcast %cst_9 : f32 to vector<16x128xf32>
    %24 = arith.mulf %23, %22 : vector<16x128xf32>
    %cst_10 = arith.constant 0.707106769 : f32
    %25 = vector.broadcast %cst_10 : f32 to vector<16x128xf32>
    %26 = arith.mulf %22, %25 : vector<16x128xf32>
    %27 = math.erf %26 : vector<16x128xf32>
    %cst_11 = arith.constant 1.000000e+00 : f32
    %28 = vector.broadcast %cst_11 : f32 to vector<16x128xf32>
    %29 = arith.addf %28, %27 : vector<16x128xf32>
    %30 = arith.mulf %24, %29 : vector<16x128xf32>
    %31 = arith.truncf %30 : vector<16x128xf32> to vector<16x128xbf16>
    %c0_12 = arith.constant 0 : index
    %c0_13 = arith.constant 0 : index
    %32 = vector.load %arg4[%c0_12, %c0_13] : memref<128x128xbf16, #tpu.memory_space<vmem>>, vector<128x128xbf16>
    %cst_14 = arith.constant dense<0.000000e+00> : vector<16x128xf32>
    %33 = tpu.matmul %31, %32, %cst_14 {dimension_numbers = #tpu.dot_dimension_numbers<[1], [0], [0], [1], [0, 0, 1, 1], [], []>} : vector<16x128xbf16>, vector<128x128xbf16>, vector<16x128xf32> -> vector<16x128xf32>
    %c0_15 = arith.constant 0 : index
    %c0_16 = arith.constant 0 : index
    %34 = vector.load %arg5[%c0_15, %c0_16] : memref<1x128xf32, #tpu.memory_space<vmem>>, vector<1x128xf32>
    %35 = vector.broadcast %34 : vector<1x128xf32> to vector<16x128xf32>
    %36 = arith.addf %33, %35 : vector<16x128xf32>
    %c0_17 = arith.constant 0 : index
    %c0_18 = arith.constant 0 : index
    %37 = vector.load %arg1[%c0_17, %c0_18] : memref<16x128xf32, #tpu.memory_space<vmem>>, vector<16x128xf32>
    %38 = arith.addf %36, %37 : vector<16x128xf32>
    %c0_19 = arith.constant 0 : index
    %c0_20 = arith.constant 0 : index
    %39 = vector.load %arg6[%c0_19, %c0_20] : memref<16x128xf32, #tpu.memory_space<vmem>>, vector<16x128xf32>
    tpu.vector_store %arg6[%c0_19, %c0_20], %38 {strides = array<i32>} : memref<16x128xf32, #tpu.memory_space<vmem>>, vector<16x128xf32>,
    return
  }
  func.func @transform_0(%arg0: i32) -> (i32, i32) {
    %c0_i32 = arith.constant 0 : i32
    %c0_i32_0 = arith.constant 0 : i32
    return %arg0, %c0_i32 : i32, i32
  }
  func.func @transform_1(%arg0: i32) -> (i32, i32) {
    %c0_i32 = arith.constant 0 : i32
    %c0_i32_0 = arith.constant 0 : i32
    %c0_i32_1 = arith.constant 0 : i32
    return %c0_i32, %c0_i32_0 : i32, i32
  }
  func.func @transform_2(%arg0: i32) -> (i32, i32) {
    %c0_i32 = arith.constant 0 : i32
    %c0_i32_0 = arith.constant 0 : i32
    %c0_i32_1 = arith.constant 0 : i32
    return %c0_i32, %c0_i32_0 : i32, i32
  }
  func.func @transform_3(%arg0: i32) -> (i32, i32) {
    %c0_i32 = arith.constant 0 : i32
    %c0_i32_0 = arith.constant 0 : i32
    %c0_i32_1 = arith.constant 0 : i32
    return %c0_i32, %c0_i32_0 : i32, i32
  }
  func.func @transform_4(%arg0: i32) -> (i32, i32) {
    %c0_i32 = arith.constant 0 : i32
    %c0_i32_0 = arith.constant 0 : i32
    %c0_i32_1 = arith.constant 0 : i32
    return %c0_i32, %c0_i32_0 : i32, i32
  }
  func.func @transform_5(%arg0: i32) -> (i32, i32) {
    %c0_i32 = arith.constant 0 : i32
    %c0_i32_0 = arith.constant 0 : i32
    return %arg0, %c0_i32 : i32, i32
  }
}

</mosaic_0001>

<llo_original>
// kernel: tpu_custom_call.1
$region0: #{tpu_custom_call.1}
  #allocation0 [shape = 'u32[]', space=smem, size = 0x4, offset = 0x4, fixed_abs, tag = 'smem constant byte address 0x4 - core index']
  #allocation1 [shape = 'u32[144,128]{1,0:T(1,128)}', space=vmem, size = 0x12000, scoped, tag = 'internal scratch']
  %s0 = inlined_call_operand.hbm [shape: f32[16,128], index: 0, kind: input, shape index: {}]
  %s1 = inlined_call_operand.vmem [shape: f32[1,128], index: 1, kind: input, shape index: {}]
  %s2 = inlined_call_operand.vmem [shape: f32[1,128], index: 2, kind: input, shape index: {}]
  %s3 = inlined_call_operand.hbm [shape: bf16[128,128], index: 3, kind: input, shape index: {}]
  %s4 = inlined_call_operand.vmem [shape: f32[1,128], index: 4, kind: input, shape index: {}]
  %s5 = inlined_call_operand.hbm [shape: f32[16,128], index: 5, kind: output, shape index: {}]
  %s6 = sld [smem:[#allocation0]]
  $region38: #{tpu_custom_call.1} parent=0
    _
  %s8 = ssub.s32 1, %s6
  %s9 = scalar_select 0, %s8, %s6
  $region1: #{tpu_custom_call.1} parent=0
    #allocation2 [shape = 'u8[8192]{0}', space=vmem, size = 0x2000, scoped, tag = 'input window, operand 0, single buffered']
    #allocation3 [shape = 's32[1]{0}', space=sflag, size = 0x4, scoped, tag = 'scoped memory for tpu_custom_call.1']
    #allocation4 [shape = 's32[1]{0}', space=sflag, size = 0x4, scoped, tag = 'scoped memory for tpu_custom_call.1']
    #allocation5 [shape = 'u8[32768]{0}', space=vmem, size = 0x8000, scoped, tag = 'input window, operand 3, single buffered']
    #allocation6 [shape = 's32[1]{0}', space=sflag, size = 0x4, scoped, tag = 'scoped memory for tpu_custom_call.1']
    #allocation7 [shape = 'u8[8192]{0}', space=vmem, size = 0x2000, scoped, tag = 'output window, operand 0, single buffered']
    %10 = vsyncpa [#allocation3], 0
    %11 = vsyncpa [#allocation6], 0
    %12 = vsyncpa [#allocation4], 0
    // Predicated region
    $region2: #{tpu_custom_call.1} parent=1 // pred_check
      _
    $region3: #{tpu_custom_call.1} parent=1 // pred_check_branch
      %14 = sbr.rel (0) target = $region5
    $region4: #{tpu_custom_call.1} parent=1 // pred_region
      %s16 = ssub.s32 256, 256
      %17 = vsyncadd [#allocation3], %s16
      %s18 = sshll.u32 [#allocation2], 4
      %s19 = int_to_ptr.vmem [resolvable:$true] %s18
      %24 = dma.hbm_to_vmem [thread:$0]  %s0, 256, %s19, [#allocation3], 128, 128, 8
    $region5: #{tpu_custom_call.1} parent=1 // pred_fallthru
      _
    // Predicated region
    $region6: #{tpu_custom_call.1} parent=1 // pred_check
      _
    $region7: #{tpu_custom_call.1} parent=1 // pred_check_branch
      %26 = sbr.rel (0) target = $region9
    $region8: #{tpu_custom_call.1} parent=1 // pred_region
      _
    $region9: #{tpu_custom_call.1} parent=1 // pred_fallthru
      _
    // Predicated region
    $region10: #{tpu_custom_call.1} parent=1 // pred_check
      _
    $region11: #{tpu_custom_call.1} parent=1 // pred_check_branch
      %28 = sbr.rel (0) target = $region13
    $region12: #{tpu_custom_call.1} parent=1 // pred_region
      _
    $region13: #{tpu_custom_call.1} parent=1 // pred_fallthru
      _
    // Predicated region
    $region14: #{tpu_custom_call.1} parent=1 // pred_check
      _
    $region15: #{tpu_custom_call.1} parent=1 // pred_check_branch
      %30 = sbr.rel (0) target = $region17
    $region16: #{tpu_custom_call.1} parent=1 // pred_region
      %s32 = ssub.s32 1024, 1024
      %33 = vsyncadd [#allocation6], %s32
      %s34 = sshll.u32 [#allocation5], 4
      %s35 = int_to_ptr.vmem [resolvable:$true] %s34
      %40 = dma.hbm_to_vmem [thread:$0]  %s3, 1024, %s35, [#allocation6], 64, 64, 4
    $region17: #{tpu_custom_call.1} parent=1 // pred_fallthru
      _
    // Predicated region
    $region18: #{tpu_custom_call.1} parent=1 // pred_check
      _
    $region19: #{tpu_custom_call.1} parent=1 // pred_check_branch
      %42 = sbr.rel (0) target = $region21
    $region20: #{tpu_custom_call.1} parent=1 // pred_region
      _
    $region21: #{tpu_custom_call.1} parent=1 // pred_fallthru
      _
    // Predicated region
    $region22: #{tpu_custom_call.1} parent=1 // pred_check
      _
    $region23: #{tpu_custom_call.1} parent=1 // pred_check_branch
      %44 = sbr.rel (0) target = $region25
    $region24: #{tpu_custom_call.1} parent=1 // pred_region
      %45 = dma.done [#allocation3], 256
    $region25: #{tpu_custom_call.1} parent=1 // pred_fallthru
      _
    // Predicated region
    $region26: #{tpu_custom_call.1} parent=1 // pred_check
      _
    $region27: #{tpu_custom_call.1} parent=1 // pred_check_branch
      %47 = sbr.rel (0) target = $region29
    $region28: #{tpu_custom_call.1} parent=1 // pred_region
      %48 = dma.done [#allocation6], 1024
    $region29: #{tpu_custom_call.1} parent=1 // pred_fallthru
      _
    %v50 = vld [vmem:[#allocation2] sm:$0xff]
    %v51 = vld [vmem:[#allocation2 + $0x8] sm:$0xff]
    %52 = vadd.xlane.f32.xlu0 %v50
    %v53 = vpop.xlane.xlu0 %52
    %54 = vadd.xlane.f32.xlu0 %v51
    %v55 = vpop.xlane.xlu0 %54
    %v56 = vrcp.pop 128.0
    %v57 = vmul.f32 %v53, %v56
    %v58 = vmul.f32 %v55, %v56
    %v59 = vsub.f32 %v50, %v57
    %v60 = vsub.f32 %v51, %v58
    %v61 = vmul.f32 %v59, %v59
    %v62 = vmul.f32 %v60, %v60
    %63 = vadd.xlane.f32.xlu0 %v61
    %v64 = vpop.xlane.xlu0 %63
    %65 = vadd.xlane.f32.xlu0 %v62
    %v66 = vpop.xlane.xlu0 %65
    %v67 = vmul.f32 %v64, %v56
    %v68 = vmul.f32 %v66, %v56
    %v69 = vadd.f32 %v67, 1e-05
    %v70 = vadd.f32 %v68, 1e-05
    %v71 = vrsqrt.pop %v69
    %v72 = vrsqrt.pop %v70
    %v73 = vmul.f32 %v59, %v71
    %v74 = vmul.f32 %v60, %v72
    %v75 = vld [vmem:[%s1] sm:$0x1]
    %v77 = vlaneseq
    %v78 = vshrl.u32 %v77, 7
    %v79 = vsub.s32 0, %v78
    %v80 = vrot.slane %v75, %v79
    %v82 = vmul.f32 %v73, %v80
    %v83 = vmul.f32 %v74, %v80
    %v84 = vld [vmem:[%s2] sm:$0x1]
    %v86 = vlaneseq
    %v87 = vshrl.u32 %v86, 7
    %v88 = vsub.s32 0, %v87
    %v89 = vrot.slane %v84, %v88
    %v91 = vadd.f32 %v82, %v89
    %v92 = vadd.f32 %v83, %v89
    %v93 = vmul.f32 %v91, 0.5
    %v94 = vmul.f32 %v92, 0.5
    %v95 = vmul.f32 %v91, 0.70710677
    %v96 = vmul.f32 %v92, 0.70710677
    %v97 = verf.f32.pop %v95
    %v98 = verf.f32.pop %v96
    %v99 = vadd.f32 %v97, 1.0
    %v100 = vadd.f32 %v98, 1.0
    %v101 = vmul.f32 %v93, %v99
    %v102 = vmul.f32 %v94, %v100
    %v103 = vpack.c.bf16 %v102, %v101
    %v104 = vld [vmem:[#allocation5] sm:$0xf]
    %v105 = vld [vmem:[#allocation5 + $0x4] sm:$0xf]
    %v106 = vld [vmem:[#allocation5 + $0x8] sm:$0xf]
    %v107 = vld [vmem:[#allocation5 + $0xc] sm:$0xf]
    %v108 = vld [vmem:[#allocation5 + $0x10] sm:$0xf]
    %v109 = vld [vmem:[#allocation5 + $0x14] sm:$0xf]
    %v110 = vld [vmem:[#allocation5 + $0x18] sm:$0xf]
    %v111 = vld [vmem:[#allocation5 + $0x1c] sm:$0xf]
    %v112 = vld [vmem:[#allocation5 + $0x20] sm:$0xf]
    %v113 = vld [vmem:[#allocation5 + $0x24] sm:$0xf]
    %v114 = vld [vmem:[#allocation5 + $0x28] sm:$0xf]
    %v115 = vld [vmem:[#allocation5 + $0x2c] sm:$0xf]
    %v116 = vld [vmem:[#allocation5 + $0x30] sm:$0xf]
    %v117 = vld [vmem:[#allocation5 + $0x34] sm:$0xf]
    %v118 = vld [vmem:[#allocation5 + $0x38] sm:$0xf]
    %v119 = vld [vmem:[#allocation5 + $0x3c] sm:$0xf]
    %v120 = vld [vmem:[%s4] sm:$0x1]
    %v122 = vlaneseq
    %v123 = vshrl.u32 %v122, 7
    %v124 = vsub.s32 0, %v123
    %v125 = vrot.slane %v120, %v124
    %v143 = vunpack.c.l.b16 %v104
    %v144 = vunpack.c.l.b16 %v105
    %v145 = vunpack.c.l.b16 %v106
    %v146 = vunpack.c.l.b16 %v107
    %v147 = vunpack.c.l.b16 %v108
    %v148 = vunpack.c.l.b16 %v109
    %v149 = vunpack.c.l.b16 %v110
    %v150 = vunpack.c.l.b16 %v111
    %v151 = vunpack.c.l.b16 %v112
    %v152 = vunpack.c.l.b16 %v113
    %v153 = vunpack.c.l.b16 %v114
    %v154 = vunpack.c.l.b16 %v115
    %v155 = vunpack.c.l.b16 %v116
    %v156 = vunpack.c.l.b16 %v117
    %v157 = vunpack.c.l.b16 %v118
    %v158 = vunpack.c.l.b16 %v119
    %v159 = vpack.c.b16 %v144, %v143
    %v160 = vpack.c.b16 %v146, %v145
    %v161 = vpack.c.b16 %v148, %v147
    %v162 = vpack.c.b16 %v150, %v149
    %v163 = vpack.c.b16 %v152, %v151
    %v164 = vpack.c.b16 %v154, %v153
    %v165 = vpack.c.b16 %v156, %v155
    %v166 = vpack.c.b16 %v158, %v157
    %175 = vmatprep.subr.bf16.mxu0 0
    %176 = vmatpush1.bf16.msra.mxu0 %v159
    %177 = vmatprep.subr.bf16.mxu0 0
    %178 = vmatpush1.bf16.msra.mxu0 %v160
    %179 = vmatprep.subr.bf16.mxu0 0
    %180 = vmatpush1.bf16.msra.mxu0 %v161
    %181 = vmatprep.subr.bf16.mxu0 0
    %182 = vmatpush1.bf16.msra.mxu0 %v162
    %183 = vmatprep.subr.bf16.mxu0 0
    %184 = vmatpush1.bf16.msra.mxu0 %v163
    %185 = vmatprep.subr.bf16.mxu0 0
    %186 = vmatpush1.bf16.msra.mxu0 %v164
    %187 = vmatprep.subr.bf16.mxu0 0
    %188 = vmatpush1.bf16.msra.mxu0 %v165
    %189 = vmatprep.subr.bf16.mxu0 0
    %190 = vmatpush1.bf16.msra.mxu0 %v166
    %191 = vmatprep.subr.bf16.mxu0 0
    %192 = vmatpush1.bf16.msra.mxu0 0
    %193 = vmatprep.subr.bf16.mxu0 0
    %194 = vmatpush1.bf16.msra.mxu0 0
    %195 = vmatprep.subr.bf16.mxu0 0
    %196 = vmatpush1.bf16.msra.mxu0 0
    %197 = vmatprep.subr.bf16.mxu0 0
    %198 = vmatpush1.bf16.msra.mxu0 0
    %199 = vmatprep.subr.bf16.mxu0 0
    %200 = vmatpush1.bf16.msra.mxu0 0
    %201 = vmatprep.subr.bf16.mxu0 0
    %202 = vmatpush1.bf16.msra.mxu0 0
    %203 = vmatprep.subr.bf16.mxu0 0
    %204 = vmatpush1.bf16.msra.mxu0 0
    %205 = vmatprep.subr.bf16.mxu0 0
    %206 = vmatpush1.bf16.msra.mxu0 0
    %207 = vmatprep.mubr.bf16.mxu0 0
    %208 = vmatmul.mubr.bf16.gmra.mrb[0].mxu0 %v103
    %v209 = vpop.f32.mrb[0].mxu0
    %v210 = vadd.f32 %v125, %v209
    %v211 = vpop.f32.mrb[0].mxu0
    %v212 = vpop.f32.mrb[0].mxu0
    %v213 = vadd.f32 %v125, %v212
    %v214 = vpop.f32.mrb[0].mxu0
    %215 = vdwg.mxu0
    %v216 = vadd.f32 %v210, %v50
    %v217 = vadd.f32 %v213, %v51
    %218 = vst [vmem:[#allocation7] sm:$0xff] %v216
    %219 = vst [vmem:[#allocation7 + $0x8] sm:$0xff] %v217
    // Predicated region
    $region30: #{tpu_custom_call.1} parent=1 // pred_check
      _
    $region31: #{tpu_custom_call.1} parent=1 // pred_check_branch
      %221 = sbr.rel (0) target = $region33
    $region32: #{tpu_custom_call.1} parent=1 // pred_region
      %s223 = ssub.s32 256, 256
      %224 = vsyncadd [#allocation4], %s223
      %s225 = sshll.u32 [#allocation7], 4
      %s226 = int_to_ptr.vmem [resolvable:$true] %s225
      %231 = dma.vmem_to_hbm [thread:$0]  %s226, 256, %s5, [#allocation4], 128, 128, 8
    $region33: #{tpu_custom_call.1} parent=1 // pred_fallthru
      _
    // Predicated region
    $region34: #{tpu_custom_call.1} parent=1 // pred_check
      _
    $region35: #{tpu_custom_call.1} parent=1 // pred_check_branch
      %233 = sbr.rel (0) target = $region37
    $region36: #{tpu_custom_call.1} parent=1 // pred_region
      %234 = dma.done [#allocation4], 256
    $region37: #{tpu_custom_call.1} parent=1 // pred_fallthru
      _
    %235 = vsyncpa [#allocation3], 1
    %236 = vsyncpa [#allocation6], 1
    %237 = vsyncpa [#allocation4], 1

</llo_original>
